<compile_context>
chip_gen: v6e
topology: v6e:2x2x1
jax: 0.10.0
libtpu: 0.0.40
codegen_flags: <defaults>
</compile_context>

<pallas_src>
import functools
import math

import jax
import jax.numpy as jnp
from jax.experimental import pallas as pl
from jax.experimental.pallas import tpu as pltpu

BN_EPS = 1e-5


# ----------------------------------------------------------------------------
# Kernel 1: one-pass BatchNorm batch statistics (sum, sum of squares)
# ----------------------------------------------------------------------------
def bn_stats_kernel(x_ref, o_ref):
    """x_ref : (B*H, W*Cin) rows of B samples, lanes = (w, ci)
    o_ref : (1, 2*W*Cin)  [ sum | sum of squares ]   (resident accumulator)
    """
    xb = x_ref[...]
    s = jnp.sum(xb, axis=0, keepdims=True)               # (1, W*Cin)
    ss = jnp.sum(xb * xb, axis=0, keepdims=True)          # (1, W*Cin)
    part = jnp.concatenate([s, ss], axis=-1)               # (1, 2*W*Cin)

    @pl.when(pl.program_id(0) == 0)
    def _():
        o_ref[...] = part

    @pl.when(pl.program_id(0) > 0)
    def _():
        o_ref[...] = o_ref[...] + part


# ----------------------------------------------------------------------------
# Kernel 2: fused folded-BN -> ReLU -> 3x3 conv (B samples per grid step)
# ----------------------------------------------------------------------------
def conv_kernel(x_ref, scale_ref, shift_ref, w_ref, b_ref, o_ref, *,
                rows_per_sample):
    """x_ref     : (B*H, W*Cin)      input rows, lanes = (w, ci)        [streams]
    scale_ref : (1, W*Cin)          folded BN scale (gamma*inv_std)    [resident]
    shift_ref : (1, W*Cin)          folded BN shift (beta - mean*scale)[resident]
    w_ref     : (3*W*Cin, W*Cout)   K-fused banded conv weights, bf16  [resident]
    b_ref     : (1, W*Cout)         conv bias tiled per w              [resident]
    o_ref     : (B*H, W*Cout)       lane-dense output rows
    """
    bh, wc_in = x_ref.shape
    h = rows_per_sample

    # BN affine (folded scale/shift) + ReLU, ONCE over the whole block in f32.
    a = jnp.maximum(x_ref[...] * scale_ref[...] + shift_ref[...], 0.0)

    # Row-shifted operands for the h-1 / h+1 kernel rows: cheap sublane shifts
    # of the single activated block.  Per-sample boundary rows are zero-masked
    # (== the conv's H zero-padding applied AFTER BN+ReLU); the masks also make
    # the shifts correct across sample boundaries inside a multi-sample block.
    row = jax.lax.broadcasted_iota(jnp.int32, (bh, wc_in), 0) % h
    zrow = jnp.zeros((1, wc_in), jnp.float32)
    a_top = jnp.where(row == 0, 0.0,
                      jnp.concatenate([zrow, a[:bh - 1, :]], axis=0))   # rows h-1
    a_bot = jnp.where(row == h - 1, 0.0,
                      jnp.concatenate([a[1:, :], zrow], axis=0))        # rows h+1

    # kh taps folded into K: one (B*H, 3*W*Cin) @ (3*W*Cin, W*Cout) MXU matmul.
    # bf16 operands (cast after the f32 BN/ReLU), f32 accumulation.
    a_cat = jnp.concatenate([a_top, a, a_bot], axis=-1).astype(jnp.bfloat16)
    acc = jnp.dot(a_cat, w_ref[...], preferred_element_type=jnp.float32)

    o_ref[...] = acc + b_ref[...]                                       # (B*H, 128)


# ----------------------------------------------------------------------------
# Wrapper: NCHW in / NCHW out (PyTorch convention)
# ----------------------------------------------------------------------------
def conv_block(x_nchw, gamma, beta, w_oihw, bias):
    N, Cin, H, W = x_nchw.shape
    Cout = w_oihw.shape[0]
    wc_in = W * Cin
    wc_out = W * Cout

    # TODO(synk): drop this relayout if upstream can supply NHWC rows directly.
    x_rows = jnp.transpose(x_nchw, (0, 2, 3, 1)).reshape(N * H, wc_in)

    # Batch blocking: B samples -> B*H matmul rows per grid step.
    target_m = 256
    b_blk = max(1, min(N, target_m // max(H, 1)))
    while N % b_blk:
        b_blk -= 1
    bh_blk = b_blk * H
    steps = N // b_blk

    # ---- pass 1: batch statistics (accumulated over the batch grid) ---------
    stats = pl.pallas_call(
        bn_stats_kernel,
        out_shape=jax.ShapeDtypeStruct((1, 2 * wc_in), jnp.float32),
        grid=(steps,),
        in_specs=[pl.BlockSpec((bh_blk, wc_in), lambda n: (n, 0))],
        out_specs=pl.BlockSpec((1, 2 * wc_in), lambda n: (0, 0)),
        compiler_params=pltpu.CompilerParams(
            dimension_semantics=("arbitrary",)),
    )(x_rows)

    # Finalize stats (fold the W groups back to per-channel) -- tiny XLA glue.
    s = stats[0, :wc_in].reshape(W, Cin).sum(axis=0)
    ss = stats[0, wc_in:].reshape(W, Cin).sum(axis=0)
    count = jnp.float32(N * H * W)
    mean = s / count
    var = ss / count - mean * mean                    # biased (training) var
    inv_std = jax.lax.rsqrt(var + BN_EPS)
    scale = gamma * inv_std
    shift = beta - mean * scale

    scale_l = jnp.tile(scale, W).reshape(1, wc_in)     # lane layout (w, ci)
    shift_l = jnp.tile(shift, W).reshape(1, wc_in)
    bias_l = jnp.tile(bias, W).reshape(1, wc_out)      # lane layout (w, co)

    # ---- banded weight: fold kw taps (and W zero-padding) into the RHS, then
    # fold the 3 kh taps into K -> one (3*W*Cin, W*Cout) bf16 slab. ------------
    w_t = jnp.transpose(w_oihw, (2, 3, 1, 0)).astype(jnp.float32)  # (kh,kw,ci,co)
    shift_eyes = jnp.stack(
        [jnp.eye(W, k=1 - kw, dtype=jnp.float32) for kw in range(3)])  # (kw,Win,Wout)
    band = jnp.einsum("kio,hkcf->hicof", shift_eyes, w_t)    # (kh,Win,ci,Wout,co)
    band = band.reshape(3 * wc_in, wc_out).astype(jnp.bfloat16)

    # ---- pass 2: fused BN/ReLU/conv, gridded & pipelined over the batch ------
    vmem_need = (2 * bh_blk * wc_in * 4          # input block, double buffered
                 + 2 * bh_blk * wc_out * 4       # output block, double buffered
                 + 2 * 3 * wc_in * wc_out * 2    # resident bf16 banded weight
                 + 4 * (2 * wc_in + wc_out) * 4)  # scale/shift/bias
    vmem_limit = int(min(64 * 1024 * 1024, max(4 * 1024 * 1024, 4 * vmem_need)))

    out_rows = pl.pallas_call(
        functools.partial(conv_kernel, rows_per_sample=H),
        out_shape=jax.ShapeDtypeStruct((N * H, wc_out), jnp.float32),
        grid=(steps,),
        in_specs=[
            pl.BlockSpec((bh_blk, wc_in), lambda n: (n, 0)),        # streams
            pl.BlockSpec((1, wc_in), lambda n: (0, 0)),             # resident
            pl.BlockSpec((1, wc_in), lambda n: (0, 0)),             # resident
            pl.BlockSpec((3 * wc_in, wc_out), lambda n: (0, 0)),    # resident
            pl.BlockSpec((1, wc_out), lambda n: (0, 0)),            # resident
        ],
        out_specs=pl.BlockSpec((bh_blk, wc_out), lambda n: (n, 0)),
        compiler_params=pltpu.CompilerParams(
            dimension_semantics=("parallel",),
            vmem_limit_bytes=vmem_limit),
    )(x_rows, scale_l, shift_l, band, bias_l)

    out_nhwc = out_rows.reshape(N, H, W, Cout)
    # TODO(synk): drop this relayout if downstream can consume NHWC directly.
    return jnp.transpose(out_nhwc, (0, 3, 1, 2))       # NCHW


# ----------------------------------------------------------------------------
# Parameter init mirroring the PyTorch module __init__ (setup-time JAX glue)
# ----------------------------------------------------------------------------
def make_params(key, in_channels, out_channels):
    k_w, k_b, k_u = jax.random.split(key, 3)

    # xavier_normal_ on the Conv2d weight (Cout, Cin, 3, 3)
    fan_in = in_channels * 9
    fan_out = out_channels * 9
    std = math.sqrt(2.0 / (fan_in + fan_out))
    w = jax.random.normal(k_w, (out_channels, in_channels, 3, 3), jnp.float32) * std

    # Conv2d default bias init: U(-1/sqrt(fan_in), 1/sqrt(fan_in))
    bound = 1.0 / math.sqrt(fan_in)
    bias = jax.random.uniform(k_b, (out_channels,), jnp.float32, -bound, bound)

    # spectral_norm: one power iteration on W reshaped to (Cout, Cin*9)
    wmat = w.reshape(out_channels, -1)
    u = jax.random.normal(k_u, (out_channels,), jnp.float32)
    u = u / (jnp.linalg.norm(u) + 1e-12)
    v = wmat.T @ u
    v = v / (jnp.linalg.norm(v) + 1e-12)
    u = wmat @ v
    u = u / (jnp.linalg.norm(u) + 1e-12)
    sigma = u @ (wmat @ v)
    w_sn = w / sigma

    # BatchNorm2d affine params (fresh module: gamma=1, beta=0)
    gamma = jnp.ones((in_channels,), jnp.float32)
    beta = jnp.zeros((in_channels,), jnp.float32)
    return gamma, beta, w_sn, bias


# ----------------------------------------------------------------------------
# Pure-JAX reference of the same forward pass (verification)
# ----------------------------------------------------------------------------
def reference(x_nchw, gamma, beta, w_oihw, bias):
    mean = jnp.mean(x_nchw, axis=(0, 2, 3), keepdims=True)
    var = jnp.mean((x_nchw - mean) ** 2, axis=(0, 2, 3), keepdims=True)
    a = (x_nchw - mean) * jax.lax.rsqrt(var + BN_EPS)
    a = a * gamma.reshape(1, -1, 1, 1) + beta.reshape(1, -1, 1, 1)
    a = jnp.maximum(a, 0.0)
    out = jax.lax.conv_general_dilated(
        a, w_oihw, window_strides=(1, 1), padding="SAME",
        dimension_numbers=("NCHW", "OIHW", "NCHW"),
        precision=jax.lax.Precision.HIGHEST)
    return out + bias.reshape(1, -1, 1, 1)


if __name__ == "__main__":
    in_channels, out_channels = 4, 8
    N, H, W = 2, 16, 16

    key = jax.random.PRNGKey(0)
    k_params, k_x = jax.random.split(key)
    gamma, beta, w_sn, bias = make_params(k_params, in_channels, out_channels)
    x = jax.random.normal(k_x, (N, in_channels, H, W), jnp.float32)

    out = jax.jit(conv_block)(x, gamma, beta, w_sn, bias)
    out = jax.block_until_ready(out)

    ref = reference(x, gamma, beta, w_sn, bias)
    assert out.shape == (N, out_channels, H, W)
    # Tolerance covers bf16 MXU operands (f32 accumulation); BN/ReLU is exact f32.
    assert jnp.allclose(out, ref, rtol=2e-2, atol=2e-2), (
        f"max abs err {jnp.max(jnp.abs(out - ref))}")

    print("KERNEL_OK")
</pallas_src>

<mosaic_0001>
module attributes {stable_mosaic.version = 11 : i64} {
  func.func @bn_stats_kernel(%arg0: i32, %arg1: memref<32x64xf32, #tpu.memory_space<vmem>>, %arg2: memref<1x128xf32, #tpu.memory_space<vmem>>) attributes {dimension_semantics = [#tpu.dimension_semantics<arbitrary>], iteration_bounds = array<i64: 1>, scalar_prefetch = 0 : i64, scratch_operands = 0 : i64, tpu.core_type = #tpu.core_type<tc>, window_params = [{transform_indices = @transform_0, window_bounds = array<i64: 32, 64>}, {pipeline_mode = #tpu.pipeline_mode<synchronous>, transform_indices = @transform_1, window_bounds = array<i64: 1, 128>}]} {
    %c0 = arith.constant 0 : index
    %c0_0 = arith.constant 0 : index
    %0 = vector.load %arg1[%c0, %c0_0] : memref<32x64xf32, #tpu.memory_space<vmem>>, vector<32x64xf32>
    %cst = arith.constant dense<0.000000e+00> : vector<64xf32>
    %1 = vector.multi_reduction <add>, %0, %cst [0] : vector<32x64xf32> to vector<64xf32>
    %2 = vector.shape_cast %1 : vector<64xf32> to vector<1x64xf32>
    %3 = arith.mulf %0, %0 : vector<32x64xf32>
    %cst_1 = arith.constant dense<0.000000e+00> : vector<64xf32>
    %4 = vector.multi_reduction <add>, %3, %cst_1 [0] : vector<32x64xf32> to vector<64xf32>
    %5 = vector.shape_cast %4 : vector<64xf32> to vector<1x64xf32>
    %6 = tpu.concatenate %2, %5 in 1 : vector<1x64xf32>, vector<1x64xf32> -> vector<1x128xf32>
    %c0_i32 = arith.constant 0 : i32
    %7 = arith.cmpi eq, %arg0, %c0_i32 : i32
    %8 = arith.extui %7 : i1 to i32
    %c0_i32_2 = arith.constant 0 : i32
    %9 = arith.cmpi ne, %8, %c0_i32_2 : i32
    scf.if %9 {
      %c0_5 = arith.constant 0 : index
      %c0_6 = arith.constant 0 : index
      %13 = vector.load %arg2[%c0_5, %c0_6] : memref<1x128xf32, #tpu.memory_space<vmem>>, vector<1x128xf32>
      tpu.vector_store %arg2[%c0_5, %c0_6], %6 {strides = array<i32>} : memref<1x128xf32, #tpu.memory_space<vmem>>, vector<1x128xf32>,
    } else {
    }
    %c0_i32_3 = arith.constant 0 : i32
    %10 = arith.cmpi sgt, %arg0, %c0_i32_3 : i32
    %11 = arith.extui %10 : i1 to i32
    %c0_i32_4 = arith.constant 0 : i32
    %12 = arith.cmpi ne, %11, %c0_i32_4 : i32
    scf.if %12 {
      %c0_5 = arith.constant 0 : index
      %c0_6 = arith.constant 0 : index
      %13 = vector.load %arg2[%c0_5, %c0_6] : memref<1x128xf32, #tpu.memory_space<vmem>>, vector<1x128xf32>
      %14 = arith.addf %13, %6 : vector<1x128xf32>
      %c0_7 = arith.constant 0 : index
      %c0_8 = arith.constant 0 : index
      %15 = vector.load %arg2[%c0_7, %c0_8] : memref<1x128xf32, #tpu.memory_space<vmem>>, vector<1x128xf32>
      tpu.vector_store %arg2[%c0_7, %c0_8], %14 {strides = array<i32>} : memref<1x128xf32, #tpu.memory_space<vmem>>, vector<1x128xf32>,
    } else {
    }
    return
  }
  func.func @transform_0(%arg0: i32) -> (i32, i32) {
    %c0_i32 = arith.constant 0 : i32
    %c0_i32_0 = arith.constant 0 : i32
    return %arg0, %c0_i32 : i32, i32
  }
  func.func @transform_1(%arg0: i32) -> (i32, i32) {
    %c0_i32 = arith.constant 0 : i32
    %c0_i32_0 = arith.constant 0 : i32
    %c0_i32_1 = arith.constant 0 : i32
    return %c0_i32, %c0_i32_0 : i32, i32
  }
}

module attributes {stable_mosaic.version = 11 : i64} {
  func.func @conv_kernel(%arg0: i32, %arg1: memref<32x64xf32, #tpu.memory_space<vmem>>, %arg2: memref<1x64xf32, #tpu.memory_space<vmem>>, %arg3: memref<1x64xf32, #tpu.memory_space<vmem>>, %arg4: memref<192x128xbf16, #tpu.memory_space<vmem>>, %arg5: memref<1x128xf32, #tpu.memory_space<vmem>>, %arg6: memref<32x128xf32, #tpu.memory_space<vmem>>) attributes {dimension_semantics = [#tpu.dimension_semantics<parallel>], iteration_bounds = array<i64: 1>, scalar_prefetch = 0 : i64, scratch_operands = 0 : i64, tpu.core_type = #tpu.core_type<tc>, window_params = [{transform_indices = @transform_0, window_bounds = array<i64: 32, 64>}, {pipeline_mode = #tpu.pipeline_mode<synchronous>, transform_indices = @transform_1, window_bounds = array<i64: 1, 64>}, {pipeline_mode = #tpu.pipeline_mode<synchronous>, transform_indices = @transform_2, window_bounds = array<i64: 1, 64>}, {pipeline_mode = #tpu.pipeline_mode<synchronous>, transform_indices = @transform_3, window_bounds = array<i64: 192, 128>}, {pipeline_mode = #tpu.pipeline_mode<synchronous>, transform_indices = @transform_4, window_bounds = array<i64: 1, 128>}, {transform_indices = @transform_5, window_bounds = array<i64: 32, 128>}]} {
    %c0 = arith.constant 0 : index
    %c0_0 = arith.constant 0 : index
    %0 = vector.load %arg1[%c0, %c0_0] : memref<32x64xf32, #tpu.memory_space<vmem>>, vector<32x64xf32>
    %c0_1 = arith.constant 0 : index
    %c0_2 = arith.constant 0 : index
    %1 = vector.load %arg2[%c0_1, %c0_2] : memref<1x64xf32, #tpu.memory_space<vmem>>, vector<1x64xf32>
    %2 = vector.broadcast %1 : vector<1x64xf32> to vector<32x64xf32>
    %3 = arith.mulf %0, %2 : vector<32x64xf32>
    %c0_3 = arith.constant 0 : index
    %c0_4 = arith.constant 0 : index
    %4 = vector.load %arg3[%c0_3, %c0_4] : memref<1x64xf32, #tpu.memory_space<vmem>>, vector<1x64xf32>
    %5 = vector.broadcast %4 : vector<1x64xf32> to vector<32x64xf32>
    %6 = arith.addf %3, %5 : vector<32x64xf32>
    %cst = arith.constant 0.000000e+00 : f32
    %7 = vector.broadcast %cst : f32 to vector<32x64xf32>
    %8 = arith.maximumf %6, %7 : vector<32x64xf32>
    %9 = tpu.iota {dimensions = array<i32: 0>} : vector<32x64xi32>
    %c16_i32 = arith.constant 16 : i32
    %c0_i32 = arith.constant 0 : i32
    %10 = arith.cmpi eq, %c16_i32, %c0_i32 : i32
    %c1_i32 = arith.constant 1 : i32
    %11 = arith.select %10, %c1_i32, %c16_i32 : i32
    %12 = vector.broadcast %11 : i32 to vector<32x64xi32>
    %13 = arith.remsi %9, %12 : vector<32x64xi32>
    %c0_i32_5 = arith.constant 0 : i32
    %14 = vector.broadcast %c0_i32_5 : i32 to vector<32x64xi32>
    %15 = arith.cmpi ne, %13, %14 : vector<32x64xi32>
    %c0_i32_6 = arith.constant 0 : i32
    %16 = vector.broadcast %c0_i32_6 : i32 to vector<32x64xi32>
    %17 = arith.cmpi slt, %13, %16 : vector<32x64xi32>
    %c0_i32_7 = arith.constant 0 : i32
    %18 = arith.cmpi slt, %11, %c0_i32_7 : i32
    %19 = vector.broadcast %18 : i1 to vector<32x64xi1>
    %20 = vector.broadcast %19 : vector<32x64xi1> to vector<32x64xi1>
    %21 = arith.xori %17, %20 : vector<32x64xi1>
    %22 = arith.andi %21, %15 : vector<32x64xi1>
    %23 = vector.broadcast %11 : i32 to vector<32x64xi32>
    %24 = arith.addi %13, %23 : vector<32x64xi32>
    %25 = arith.select %22, %24, %13 : vector<32x64xi1>, vector<32x64xi32>
    %cst_8 = arith.constant 0.000000e+00 : f32
    %26 = vector.broadcast %cst_8 : f32 to vector<1x64xf32>
    %c0_i32_9 = arith.constant 0 : i32
    %27 = vector.broadcast %c0_i32_9 : i32 to vector<32x64xi32>
    %28 = arith.cmpi eq, %25, %27 : vector<32x64xi32>
    %29 = vector.extract_strided_slice %8 {offsets = [0, 0], sizes = [31, 64], strides = [1, 1]} : vector<32x64xf32> to vector<31x64xf32>
    %30 = tpu.concatenate %26, %29 in 0 : vector<1x64xf32>, vector<31x64xf32> -> vector<32x64xf32>
    %cst_10 = arith.constant 0.000000e+00 : f32
    %31 = vector.broadcast %cst_10 : f32 to vector<32x64xf32>
    %32 = arith.select %28, %31, %30 : vector<32x64xi1>, vector<32x64xf32>
    %c15_i32 = arith.constant 15 : i32
    %33 = vector.broadcast %c15_i32 : i32 to vector<32x64xi32>
    %34 = arith.cmpi eq, %25, %33 : vector<32x64xi32>
    %35 = vector.extract_strided_slice %8 {offsets = [1, 0], sizes = [31, 64], strides = [1, 1]} : vector<32x64xf32> to vector<31x64xf32>
    %36 = tpu.concatenate %35, %26 in 0 : vector<31x64xf32>, vector<1x64xf32> -> vector<32x64xf32>
    %cst_11 = arith.constant 0.000000e+00 : f32
    %37 = vector.broadcast %cst_11 : f32 to vector<32x64xf32>
    %38 = arith.select %34, %37, %36 : vector<32x64xi1>, vector<32x64xf32>
    %39 = tpu.concatenate %32, %8, %38 in 1 : vector<32x64xf32>, vector<32x64xf32>, vector<32x64xf32> -> vector<32x192xf32>
    %40 = arith.truncf %39 : vector<32x192xf32> to vector<32x192xbf16>
    %c0_12 = arith.constant 0 : index
    %c0_13 = arith.constant 0 : index
    %41 = vector.load %arg4[%c0_12, %c0_13] : memref<192x128xbf16, #tpu.memory_space<vmem>>, vector<192x128xbf16>
    %cst_14 = arith.constant dense<0.000000e+00> : vector<32x128xf32>
    %42 = tpu.matmul %40, %41, %cst_14 {dimension_numbers = #tpu.dot_dimension_numbers<[1], [0], [0], [1], [0, 0, 1, 1], [], []>} : vector<32x192xbf16>, vector<192x128xbf16>, vector<32x128xf32> -> vector<32x128xf32>
    %c0_15 = arith.constant 0 : index
    %c0_16 = arith.constant 0 : index
    %43 = vector.load %arg5[%c0_15, %c0_16] : memref<1x128xf32, #tpu.memory_space<vmem>>, vector<1x128xf32>
    %44 = vector.broadcast %43 : vector<1x128xf32> to vector<32x128xf32>
    %45 = arith.addf %42, %44 : vector<32x128xf32>
    %c0_17 = arith.constant 0 : index
    %c0_18 = arith.constant 0 : index
    %46 = vector.load %arg6[%c0_17, %c0_18] : memref<32x128xf32, #tpu.memory_space<vmem>>, vector<32x128xf32>
    tpu.vector_store %arg6[%c0_17, %c0_18], %45 {strides = array<i32>} : memref<32x128xf32, #tpu.memory_space<vmem>>, vector<32x128xf32>,
    return
  }
  func.func @transform_0(%arg0: i32) -> (i32, i32) {
    %c0_i32 = arith.constant 0 : i32
    %c0_i32_0 = arith.constant 0 : i32
    return %arg0, %c0_i32 : i32, i32
  }
  func.func @transform_1(%arg0: i32) -> (i32, i32) {
    %c0_i32 = arith.constant 0 : i32
    %c0_i32_0 = arith.constant 0 : i32
    %c0_i32_1 = arith.constant 0 : i32
    return %c0_i32, %c0_i32_0 : i32, i32
  }
  func.func @transform_2(%arg0: i32) -> (i32, i32) {
    %c0_i32 = arith.constant 0 : i32
    %c0_i32_0 = arith.constant 0 : i32
    %c0_i32_1 = arith.constant 0 : i32
    return %c0_i32, %c0_i32_0 : i32, i32
  }
  func.func @transform_3(%arg0: i32) -> (i32, i32) {
    %c0_i32 = arith.constant 0 : i32
    %c0_i32_0 = arith.constant 0 : i32
    %c0_i32_1 = arith.constant 0 : i32
    return %c0_i32, %c0_i32_0 : i32, i32
  }
  func.func @transform_4(%arg0: i32) -> (i32, i32) {
    %c0_i32 = arith.constant 0 : i32
    %c0_i32_0 = arith.constant 0 : i32
    %c0_i32_1 = arith.constant 0 : i32
    return %c0_i32, %c0_i32_0 : i32, i32
  }
  func.func @transform_5(%arg0: i32) -> (i32, i32) {
    %c0_i32 = arith.constant 0 : i32
    %c0_i32_0 = arith.constant 0 : i32
    return %arg0, %c0_i32 : i32, i32
  }
}

</mosaic_0001>

<llo_original>
// kernel: squeeze.2
$region0: #{squeeze.2}
  %s0 = inlined_call_operand.vmem [shape: f32[64], index: 0, kind: input, shape index: {}]
  %s1 = inlined_call_operand.vmem [shape: f32[16,4], index: 1, kind: output, shape index: {}]
  $region1: #{squeeze.2} parent=0
    #allocation0 [shape = 'u8[4096]{0}', space=vmem, size = 0x1000, scoped, tag = 'scoped mem for input reshape']
    %s3 = sshll.u32 1, 1
    %s4 = ssub.s32 %s3, 1
    %v5 = vld [vmem:[%s0] sm:%s4]
    %6 = vst [vmem:[#allocation0] sm:%s4] %v5
    %v7 = vld [vmem:[#allocation0] sm:$0x1]
    %vm8 = vcmask 31744
    %9 = vst.msk [vmem:[%s1] sm:$0x1] %vm8, %v7
    %v10 = vld [vmem:[#allocation0] sm:$0x1]
    %11 = vrot.lane.b32.xlu0 %v10, 124
    %v12 = vpop.permute.xlu0 %11
    %vm13 = vcmask 31744
    %s14 = scalar_lea.vmem %s1, 1
    %15 = vst.msk [vmem:[%s14] sm:$0x1] %vm13, %v12
    %v16 = vld [vmem:[#allocation0] sm:$0x1]
    %17 = vrot.lane.b32.xlu0 %v16, 120
    %v18 = vpop.permute.xlu0 %17
    %vm19 = vcmask 31744
    %s20 = scalar_lea.vmem %s1, 2
    %21 = vst.msk [vmem:[%s20] sm:$0x1] %vm19, %v18
    %v22 = vld [vmem:[#allocation0] sm:$0x1]
    %23 = vrot.lane.b32.xlu0 %v22, 116
    %v24 = vpop.permute.xlu0 %23
    %vm25 = vcmask 31744
    %s26 = scalar_lea.vmem %s1, 3
    %27 = vst.msk [vmem:[%s26] sm:$0x1] %vm25, %v24
    %v28 = vld [vmem:[#allocation0] sm:$0x1]
    %29 = vrot.lane.b32.xlu0 %v28, 112
    %v30 = vpop.permute.xlu0 %29
    %vm31 = vcmask 31744
    %s32 = scalar_lea.vmem %s1, 4
    %33 = vst.msk [vmem:[%s32] sm:$0x1] %vm31, %v30
    %v34 = vld [vmem:[#allocation0] sm:$0x1]
    %35 = vrot.lane.b32.xlu0 %v34, 108
    %v36 = vpop.permute.xlu0 %35
    %vm37 = vcmask 31744
    %s38 = scalar_lea.vmem %s1, 5
    %39 = vst.msk [vmem:[%s38] sm:$0x1] %vm37, %v36
    %v40 = vld [vmem:[#allocation0] sm:$0x1]
    %41 = vrot.lane.b32.xlu0 %v40, 104
    %v42 = vpop.permute.xlu0 %41
    %vm43 = vcmask 31744
    %s44 = scalar_lea.vmem %s1, 6
    %45 = vst.msk [vmem:[%s44] sm:$0x1] %vm43, %v42
    %v46 = vld [vmem:[#allocation0] sm:$0x1]
    %47 = vrot.lane.b32.xlu0 %v46, 100
    %v48 = vpop.permute.xlu0 %47
    %vm49 = vcmask 31744
    %s50 = scalar_lea.vmem %s1, 7
    %51 = vst.msk [vmem:[%s50] sm:$0x1] %vm49, %v48
    %v52 = vld [vmem:[#allocation0] sm:$0x1]
    %53 = vrot.lane.b32.xlu0 %v52, 96
    %v54 = vpop.permute.xlu0 %53
    %vm55 = vcmask 31744
    %s56 = scalar_lea.vmem %s1, 8
    %57 = vst.msk [vmem:[%s56] sm:$0x1] %vm55, %v54
    %v58 = vld [vmem:[#allocation0] sm:$0x1]
    %59 = vrot.lane.b32.xlu0 %v58, 92
    %v60 = vpop.permute.xlu0 %59
    %vm61 = vcmask 31744
    %s62 = scalar_lea.vmem %s1, 9
    %63 = vst.msk [vmem:[%s62] sm:$0x1] %vm61, %v60
    %v64 = vld [vmem:[#allocation0] sm:$0x1]
    %65 = vrot.lane.b32.xlu0 %v64, 88
    %v66 = vpop.permute.xlu0 %65
    %vm67 = vcmask 31744
    %s68 = scalar_lea.vmem %s1, 10
    %69 = vst.msk [vmem:[%s68] sm:$0x1] %vm67, %v66
    %v70 = vld [vmem:[#allocation0] sm:$0x1]
    %71 = vrot.lane.b32.xlu0 %v70, 84
    %v72 = vpop.permute.xlu0 %71
    %vm73 = vcmask 31744
    %s74 = scalar_lea.vmem %s1, 11
    %75 = vst.msk [vmem:[%s74] sm:$0x1] %vm73, %v72
    %v76 = vld [vmem:[#allocation0] sm:$0x1]
    %77 = vrot.lane.b32.xlu0 %v76, 80
    %v78 = vpop.permute.xlu0 %77
    %vm79 = vcmask 31744
    %s80 = scalar_lea.vmem %s1, 12
    %81 = vst.msk [vmem:[%s80] sm:$0x1] %vm79, %v78
    %v82 = vld [vmem:[#allocation0] sm:$0x1]
    %83 = vrot.lane.b32.xlu0 %v82, 76
    %v84 = vpop.permute.xlu0 %83
    %vm85 = vcmask 31744
    %s86 = scalar_lea.vmem %s1, 13
    %87 = vst.msk [vmem:[%s86] sm:$0x1] %vm85, %v84
    %v88 = vld [vmem:[#allocation0] sm:$0x1]
    %89 = vrot.lane.b32.xlu0 %v88, 72
    %v90 = vpop.permute.xlu0 %89
    %vm91 = vcmask 31744
    %s92 = scalar_lea.vmem %s1, 14
    %93 = vst.msk [vmem:[%s92] sm:$0x1] %vm91, %v90
    %v94 = vld [vmem:[#allocation0] sm:$0x1]
    %95 = vrot.lane.b32.xlu0 %v94, 68
    %v96 = vpop.permute.xlu0 %95
    %vm97 = vcmask 31744
    %s98 = scalar_lea.vmem %s1, 15
    %99 = vst.msk [vmem:[%s98] sm:$0x1] %vm97, %v96

// kernel: tile.18
$region0: #{tile.18}
  #allocation0 [shape = 's32[1]{0}', space=sflag, size = 0x4, scoped, tag = 'scoped memory for tile.18']
  %s0 = inlined_call_operand.vmem [shape: f32[4], index: 0, kind: input, shape index: {}]
  %s1 = inlined_call_operand.vmem [shape: f32[16,4], index: 1, kind: output, shape index: {}]
  // Predicated region
  $region2: #{tile.18} parent=0 // pred_check
    _
  $region3: #{tile.18} parent=0 // pred_check_branch
    %3 = sbr.rel (0) target = $region5
  $region4: #{tile.18} parent=0 // pred_region
    _
  $region5: #{tile.18} parent=0 // pred_fallthru
    _
  %v4 = vld [vmem:[%s0] ss:$0 sm:$0xff]
  %5 = vst [vmem:[%s1] sm:$0xff] %v4
  %s6 = scalar_lea.vmem %s1, 8
  %7 = vst [vmem:[%s6] sm:$0xff] %v4

// kernel: tile.19
$region0: #{tile.19}
  %s0 = inlined_call_operand.vmem [shape: f32[16,4], index: 0, kind: input, shape index: {}]
  %s1 = inlined_call_operand.vmem [shape: f32[1,64], index: 1, kind: output, shape index: {}]
  $region1: #{tile.19} parent=0
    #allocation0 [shape = 'u8[4096]{0}', space=vmem, size = 0x1000, scoped, tag = 'scoped mem for output reshape']
    %v2 = vld [vmem:[%s0] sm:$0x1]
    %vm3 = vcmask 31744
    %4 = vst.msk [vmem:[#allocation0] sm:$0x1] %vm3, %v2
    %s5 = scalar_lea.vmem %s0, 15
    %v6 = vld [vmem:[%s5] sm:$0x1]
    %7 = vrot.lane.b32.xlu0 %v6, 60
    %v8 = vpop.permute.xlu0 %7
    %vm9 = vcmask 523744
    %10 = vst.msk [vmem:[#allocation0] sm:$0x1] %vm9, %v8
    %s11 = scalar_lea.vmem %s0, 14
    %v12 = vld [vmem:[%s11] sm:$0x1]
    %13 = vrot.lane.b32.xlu0 %v12, 56
    %v14 = vpop.permute.xlu0 %13
    %vm15 = vcmask 490944
    %16 = vst.msk [vmem:[#allocation0] sm:$0x1] %vm15, %v14
    %s17 = scalar_lea.vmem %s0, 13
    %v18 = vld [vmem:[%s17] sm:$0x1]
    %19 = vrot.lane.b32.xlu0 %v18, 52
    %v20 = vpop.permute.xlu0 %19
    %vm21 = vcmask 458144
    %22 = vst.msk [vmem:[#allocation0] sm:$0x1] %vm21, %v20
    %s23 = scalar_lea.vmem %s0, 12
    %v24 = vld [vmem:[%s23] sm:$0x1]
    %25 = vrot.lane.b32.xlu0 %v24, 48
    %v26 = vpop.permute.xlu0 %25
    %vm27 = vcmask 425344
    %28 = vst.msk [vmem:[#allocation0] sm:$0x1] %vm27, %v26
    %s29 = scalar_lea.vmem %s0, 11
    %v30 = vld [vmem:[%s29] sm:$0x1]
    %31 = vrot.lane.b32.xlu0 %v30, 44
    %v32 = vpop.permute.xlu0 %31
    %vm33 = vcmask 392544
    %34 = vst.msk [vmem:[#allocation0] sm:$0x1] %vm33, %v32
    %s35 = scalar_lea.vmem %s0, 10
    %v36 = vld [vmem:[%s35] sm:$0x1]
    %37 = vrot.lane.b32.xlu0 %v36, 40
    %v38 = vpop.permute.xlu0 %37
    %vm39 = vcmask 359744
    %40 = vst.msk [vmem:[#allocation0] sm:$0x1] %vm39, %v38
    %s41 = scalar_lea.vmem %s0, 9
    %v42 = vld [vmem:[%s41] sm:$0x1]
    %43 = vrot.lane.b32.xlu0 %v42, 36
    %v44 = vpop.permute.xlu0 %43
    %vm45 = vcmask 326944
    %46 = vst.msk [vmem:[#allocation0] sm:$0x1] %vm45, %v44
    %s47 = scalar_lea.vmem %s0, 8
    %v48 = vld [vmem:[%s47] sm:$0x1]
    %49 = vrot.lane.b32.xlu0 %v48, 32
    %v50 = vpop.permute.xlu0 %49
    %vm51 = vcmask 294144
    %52 = vst.msk [vmem:[#allocation0] sm:$0x1] %vm51, %v50
    %s53 = scalar_lea.vmem %s0, 7
    %v54 = vld [vmem:[%s53] sm:$0x1]
    %55 = vrot.lane.b32.xlu0 %v54, 28
    %v56 = vpop.permute.xlu0 %55
    %vm57 = vcmask 261344
    %58 = vst.msk [vmem:[#allocation0] sm:$0x1] %vm57, %v56
    %s59 = scalar_lea.vmem %s0, 6
    %v60 = vld [vmem:[%s59] sm:$0x1]
    %61 = vrot.lane.b32.xlu0 %v60, 24
    %v62 = vpop.permute.xlu0 %61
    %vm63 = vcmask 228544
    %64 = vst.msk [vmem:[#allocation0] sm:$0x1] %vm63, %v62
    %s65 = scalar_lea.vmem %s0, 5
    %v66 = vld [vmem:[%s65] sm:$0x1]
    %67 = vrot.lane.b32.xlu0 %v66, 20
    %v68 = vpop.permute.xlu0 %67
    %vm69 = vcmask 195744
    %70 = vst.msk [vmem:[#allocation0] sm:$0x1] %vm69, %v68
    %s71 = scalar_lea.vmem %s0, 4
    %v72 = vld [vmem:[%s71] sm:$0x1]
    %73 = vrot.lane.b32.xlu0 %v72, 16
    %v74 = vpop.permute.xlu0 %73
    %vm75 = vcmask 162944
    %76 = vst.msk [vmem:[#allocation0] sm:$0x1] %vm75, %v74
    %s77 = scalar_lea.vmem %s0, 3
    %v78 = vld [vmem:[%s77] sm:$0x1]
    %79 = vrot.lane.b32.xlu0 %v78, 12
    %v80 = vpop.permute.xlu0 %79
    %vm81 = vcmask 130144
    %82 = vst.msk [vmem:[#allocation0] sm:$0x1] %vm81, %v80
    %s83 = scalar_lea.vmem %s0, 2
    %v84 = vld [vmem:[%s83] sm:$0x1]
    %85 = vrot.lane.b32.xlu0 %v84, 8
    %v86 = vpop.permute.xlu0 %85
    %vm87 = vcmask 97344
    %88 = vst.msk [vmem:[#allocation0] sm:$0x1] %vm87, %v86
    %s89 = scalar_lea.vmem %s0, 1
    %v90 = vld [vmem:[%s89] sm:$0x1]
    %91 = vrot.lane.b32.xlu0 %v90, 4
    %v92 = vpop.permute.xlu0 %91
    %vm93 = vcmask 64544
    %94 = vst.msk [vmem:[#allocation0] sm:$0x1] %vm93, %v92
    %s96 = sshll.u32 1, 1
    %s97 = ssub.s32 %s96, 1
    %v99 = vld [vmem:[#allocation0] sm:%s97]
    %s100 = sshll.u32 1, 1
    %s101 = ssub.s32 %s100, 1
    %102 = vst [vmem:[%s1] sm:%s101] %v99

// kernel: conv_block.2
$region0: #{conv_block.2}
  #allocation0 [shape = 'u32[]', space=smem, size = 0x4, offset = 0x4, fixed_abs, tag = 'smem constant byte address 0x4 - core index']
  #allocation1 [shape = 'u32[144,128]{1,0:T(1,128)}', space=vmem, size = 0x12000, scoped, tag = 'internal scratch']
  %s0 = inlined_call_operand.vmem [shape: f32[32,64], index: 0, kind: input, shape index: {}]
  %s1 = inlined_call_operand.vmem [shape: f32[1,128], index: 1, kind: output, shape index: {}]
  %s2 = sld [smem:[#allocation0]]
  $region22: #{conv_block.2} parent=0
    _
  %s4 = ssub.s32 1, %s2
  %s5 = scalar_select 0, %s4, %s2
  // Predicated region
  $region2: #{conv_block.2} parent=0 // pred_check
    _
  $region3: #{conv_block.2} parent=0 // pred_check_branch
    %7 = sbr.rel (0) target = $region5
  $region4: #{conv_block.2} parent=0 // pred_region
    _
  $region5: #{conv_block.2} parent=0 // pred_fallthru
    _
  %v8 = vld [vmem:[%s0] sm:$0xff]
  %v9 = vld [vmem:[%s0 + $0x8] sm:$0xff]
  %v10 = vld [vmem:[%s0 + $0x10] sm:$0xff]
  %v11 = vld [vmem:[%s0 + $0x18] sm:$0xff]
  %vm12 = vcmask 523264
  %v13 = vsel %vm12, %v8, 0.0
  %v14 = vsel %vm12, %v9, 0.0
  %v15 = vadd.f32 %v13, %v14
  %v16 = vsel %vm12, %v10, 0.0
  %v17 = vadd.f32 %v15, %v16
  %v18 = vsel %vm12, %v11, 0.0
  %v19 = vadd.f32 %v17, %v18
  %v20 = vrot.slane %v19, 4
  %v21 = vadd.f32 %v19, %v20
  %v22 = vrot.slane %v21, 2
  %v23 = vadd.f32 %v21, %v22
  %v24 = vrot.slane %v23, 1
  %v25 = vadd.f32 %v23, %v24
  %v26 = vmul.f32 %v8, %v8
  %v27 = vmul.f32 %v9, %v9
  %v28 = vmul.f32 %v10, %v10
  %v29 = vmul.f32 %v11, %v11
  %v30 = vsel %vm12, %v26, 0.0
  %v31 = vsel %vm12, %v27, 0.0
  %v32 = vadd.f32 %v30, %v31
  %v33 = vsel %vm12, %v28, 0.0
  %v34 = vadd.f32 %v32, %v33
  %v35 = vsel %vm12, %v29, 0.0
  %v36 = vadd.f32 %v34, %v35
  %v37 = vrot.slane %v36, 4
  %v38 = vadd.f32 %v36, %v37
  %v39 = vrot.slane %v38, 2
  %v40 = vadd.f32 %v38, %v39
  %v41 = vrot.slane %v40, 1
  %v42 = vadd.f32 %v40, %v41
  %44 = vrot.lane.b32.xlu0 %v42, 64
  %v45 = vpop.permute.xlu0 %44
  %v47 = vsel %vm12, %v25, %v45
  %p48 = scmp.eq.s32.totalorder 0, 0
  // Predicated region
  $region6: #{conv_block.2} parent=0 // pred_check
    %p49 = pneg %p48
  $region7: #{conv_block.2} parent=0 // pred_check_branch
    %51 = sbr.rel (%p49) target = $region9
  $region8: #{conv_block.2} parent=0 // pred_region
    %52 = vst [vmem:[%s1] sm:$0x1] %v47
  $region9: #{conv_block.2} parent=0 // pred_fallthru
    _
  %p53 = scmp.gt.s32.totalorder 0, 0
  // Predicated region
  $region10: #{conv_block.2} parent=0 // pred_check
    %p54 = pneg %p53
  $region11: #{conv_block.2} parent=0 // pred_check_branch
    %56 = sbr.rel (%p54) target = $region13
  $region12: #{conv_block.2} parent=0 // pred_region
    %v57 = vld [vmem:[%s1] sm:$0x1]
    %v58 = vadd.f32 %v57, %v47
    %59 = vst [vmem:[%s1] sm:$0x1] %v58
  $region13: #{conv_block.2} parent=0 // pred_fallthru
    _
  // Predicated region
  $region14: #{conv_block.2} parent=0 // pred_check
    _
  $region15: #{conv_block.2} parent=0 // pred_check_branch
    %61 = sbr.rel (0) target = $region17
  $region16: #{conv_block.2} parent=0 // pred_region
    _
  $region17: #{conv_block.2} parent=0 // pred_fallthru
    _
  // Predicated region
  $region18: #{conv_block.2} parent=0 // pred_check
    _
  $region19: #{conv_block.2} parent=0 // pred_check_branch
    %63 = sbr.rel (0) target = $region21
  $region20: #{conv_block.2} parent=0 // pred_region
    _
  $region21: #{conv_block.2} parent=0 // pred_fallthru
    _

// kernel: tile.28
$region0: #{tile.28}
  #allocation0 [shape = 's32[1]{0}', space=sflag, size = 0x4, scoped, tag = 'scoped memory for tile.28']
  %s0 = inlined_call_operand.vmem [shape: f32[8], index: 0, kind: input, shape index: {}]
  %s1 = inlined_call_operand.vmem [shape: f32[16,8], index: 1, kind: output, shape index: {}]
  // Predicated region
  $region2: #{tile.28} parent=0 // pred_check
    _
  $region3: #{tile.28} parent=0 // pred_check_branch
    %3 = sbr.rel (0) target = $region5
  $region4: #{tile.28} parent=0 // pred_region
    _
  $region5: #{tile.28} parent=0 // pred_fallthru
    _
  %v4 = vld [vmem:[%s0] ss:$0 sm:$0xff]
  %5 = vst [vmem:[%s1] sm:$0xff] %v4
  %s6 = scalar_lea.vmem %s1, 8
  %7 = vst [vmem:[%s6] sm:$0xff] %v4

// kernel: tile.29
$region0: #{tile.29}
  %s0 = inlined_call_operand.vmem [shape: f32[16,8], index: 0, kind: input, shape index: {}]
  %s1 = inlined_call_operand.vmem [shape: f32[1,128], index: 1, kind: output, shape index: {}]
  $region1: #{tile.29} parent=0
    #allocation0 [shape = 'u8[4096]{0}', space=vmem, size = 0x1000, scoped, tag = 'scoped mem for output reshape']
    %v2 = vld [vmem:[%s0] sm:$0x1]
    %vm3 = vcmask 64512
    %4 = vst.msk [vmem:[#allocation0] sm:$0x1] %vm3, %v2
    %s5 = scalar_lea.vmem %s0, 15
    %v6 = vld [vmem:[%s5] sm:$0x1]
    %7 = vrot.lane.b32.xlu0 %v6, 120
    %v8 = vpop.permute.xlu0 %7
    %vm9 = vcmask 1048512
    %10 = vst.msk [vmem:[#allocation0] sm:$0x1] %vm9, %v8
    %s11 = scalar_lea.vmem %s0, 14
    %v12 = vld [vmem:[%s11] sm:$0x1]
    %13 = vrot.lane.b32.xlu0 %v12, 112
    %v14 = vpop.permute.xlu0 %13
    %vm15 = vcmask 982912
    %16 = vst.msk [vmem:[#allocation0] sm:$0x1] %vm15, %v14
    %s17 = scalar_lea.vmem %s0, 13
    %v18 = vld [vmem:[%s17] sm:$0x1]
    %19 = vrot.lane.b32.xlu0 %v18, 104
    %v20 = vpop.permute.xlu0 %19
    %vm21 = vcmask 917312
    %22 = vst.msk [vmem:[#allocation0] sm:$0x1] %vm21, %v20
    %s23 = scalar_lea.vmem %s0, 12
    %v24 = vld [vmem:[%s23] sm:$0x1]
    %25 = vrot.lane.b32.xlu0 %v24, 96
    %v26 = vpop.permute.xlu0 %25
    %vm27 = vcmask 851712
    %28 = vst.msk [vmem:[#allocation0] sm:$0x1] %vm27, %v26
    %s29 = scalar_lea.vmem %s0, 11
    %v30 = vld [vmem:[%s29] sm:$0x1]
    %31 = vrot.lane.b32.xlu0 %v30, 88
    %v32 = vpop.permute.xlu0 %31
    %vm33 = vcmask 786112
    %34 = vst.msk [vmem:[#allocation0] sm:$0x1] %vm33, %v32
    %s35 = scalar_lea.vmem %s0, 10
    %v36 = vld [vmem:[%s35] sm:$0x1]
    %37 = vrot.lane.b32.xlu0 %v36, 80
    %v38 = vpop.permute.xlu0 %37
    %vm39 = vcmask 720512
    %40 = vst.msk [vmem:[#allocation0] sm:$0x1] %vm39, %v38
    %s41 = scalar_lea.vmem %s0, 9
    %v42 = vld [vmem:[%s41] sm:$0x1]
    %43 = vrot.lane.b32.xlu0 %v42, 72
    %v44 = vpop.permute.xlu0 %43
    %vm45 = vcmask 654912
    %46 = vst.msk [vmem:[#allocation0] sm:$0x1] %vm45, %v44
    %s47 = scalar_lea.vmem %s0, 8
    %v48 = vld [vmem:[%s47] sm:$0x1]
    %49 = vrot.lane.b32.xlu0 %v48, 64
    %v50 = vpop.permute.xlu0 %49
    %vm51 = vcmask 589312
    %52 = vst.msk [vmem:[#allocation0] sm:$0x1] %vm51, %v50
    %s53 = scalar_lea.vmem %s0, 7
    %v54 = vld [vmem:[%s53] sm:$0x1]
    %55 = vrot.lane.b32.xlu0 %v54, 56
    %v56 = vpop.permute.xlu0 %55
    %vm57 = vcmask 523712
    %58 = vst.msk [vmem:[#allocation0] sm:$0x1] %vm57, %v56
    %s59 = scalar_lea.vmem %s0, 6
    %v60 = vld [vmem:[%s59] sm:$0x1]
    %61 = vrot.lane.b32.xlu0 %v60, 48
    %v62 = vpop.permute.xlu0 %61
    %vm63 = vcmask 458112
    %64 = vst.msk [vmem:[#allocation0] sm:$0x1] %vm63, %v62
    %s65 = scalar_lea.vmem %s0, 5
    %v66 = vld [vmem:[%s65] sm:$0x1]
    %67 = vrot.lane.b32.xlu0 %v66, 40
    %v68 = vpop.permute.xlu0 %67
    %vm69 = vcmask 392512
    %70 = vst.msk [vmem:[#allocation0] sm:$0x1] %vm69, %v68
    %s71 = scalar_lea.vmem %s0, 4
    %v72 = vld [vmem:[%s71] sm:$0x1]
    %73 = vrot.lane.b32.xlu0 %v72, 32
    %v74 = vpop.permute.xlu0 %73
    %vm75 = vcmask 326912
    %76 = vst.msk [vmem:[#allocation0] sm:$0x1] %vm75, %v74
    %s77 = scalar_lea.vmem %s0, 3
    %v78 = vld [vmem:[%s77] sm:$0x1]
    %79 = vrot.lane.b32.xlu0 %v78, 24
    %v80 = vpop.permute.xlu0 %79
    %vm81 = vcmask 261312
    %82 = vst.msk [vmem:[#allocation0] sm:$0x1] %vm81, %v80
    %s83 = scalar_lea.vmem %s0, 2
    %v84 = vld [vmem:[%s83] sm:$0x1]
    %85 = vrot.lane.b32.xlu0 %v84, 16
    %v86 = vpop.permute.xlu0 %85
    %vm87 = vcmask 195712
    %88 = vst.msk [vmem:[#allocation0] sm:$0x1] %vm87, %v86
    %s89 = scalar_lea.vmem %s0, 1
    %v90 = vld [vmem:[%s89] sm:$0x1]
    %91 = vrot.lane.b32.xlu0 %v90, 8
    %v92 = vpop.permute.xlu0 %91
    %vm93 = vcmask 130112
    %94 = vst.msk [vmem:[#allocation0] sm:$0x1] %vm93, %v92
    %s96 = sshll.u32 1, 1
    %s97 = ssub.s32 %s96, 1
    %v99 = vld [vmem:[#allocation0] sm:%s97]
    %s100 = sshll.u32 1, 1
    %s101 = ssub.s32 %s100, 1
    %102 = vst [vmem:[%s1] sm:%s101] %v99

// kernel: conv_block.3
$region0: #{conv_block.3}
  #allocation0 [shape = 'u32[]', space=smem, size = 0x4, offset = 0x4, fixed_abs, tag = 'smem constant byte address 0x4 - core index']
  #allocation1 [shape = 'u32[144,128]{1,0:T(1,128)}', space=vmem, size = 0x12000, scoped, tag = 'internal scratch']
  %s0 = inlined_call_operand.vmem [shape: f32[32,64], index: 0, kind: input, shape index: {}]
  %s1 = inlined_call_operand.vmem [shape: f32[1,64], index: 1, kind: input, shape index: {}]
  %s2 = inlined_call_operand.vmem [shape: f32[1,64], index: 2, kind: input, shape index: {}]
  %s3 = inlined_call_operand.vmem [shape: bf16[192,128], index: 3, kind: input, shape index: {}]
  %s4 = inlined_call_operand.vmem [shape: f32[1,128], index: 4, kind: input, shape index: {}]
  %s5 = inlined_call_operand.vmem [shape: f32[32,128], index: 5, kind: output, shape index: {}]
  %s6 = sld [smem:[#allocation0]]
  $region30: #{conv_block.3} parent=0
    _
  %s8 = ssub.s32 1, %s6
  %s9 = scalar_select 0, %s8, %s6
  // Predicated region
  $region2: #{conv_block.3} parent=0 // pred_check
    _
  $region3: #{conv_block.3} parent=0 // pred_check_branch
    %11 = sbr.rel (0) target = $region5
  $region4: #{conv_block.3} parent=0 // pred_region
    _
  $region5: #{conv_block.3} parent=0 // pred_fallthru
    _
  // Predicated region
  $region6: #{conv_block.3} parent=0 // pred_check
    _
  $region7: #{conv_block.3} parent=0 // pred_check_branch
    %13 = sbr.rel (0) target = $region9
  $region8: #{conv_block.3} parent=0 // pred_region
    _
  $region9: #{conv_block.3} parent=0 // pred_fallthru
    _
  // Predicated region
  $region10: #{conv_block.3} parent=0 // pred_check
    _
  $region11: #{conv_block.3} parent=0 // pred_check_branch
    %15 = sbr.rel (0) target = $region13
  $region12: #{conv_block.3} parent=0 // pred_region
    _
  $region13: #{conv_block.3} parent=0 // pred_fallthru
    _
  // Predicated region
  $region14: #{conv_block.3} parent=0 // pred_check
    _
  $region15: #{conv_block.3} parent=0 // pred_check_branch
    %17 = sbr.rel (0) target = $region17
  $region16: #{conv_block.3} parent=0 // pred_region
    _
  $region17: #{conv_block.3} parent=0 // pred_fallthru
    _
  // Predicated region
  $region18: #{conv_block.3} parent=0 // pred_check
    _
  $region19: #{conv_block.3} parent=0 // pred_check_branch
    %19 = sbr.rel (0) target = $region21
  $region20: #{conv_block.3} parent=0 // pred_region
    _
  $region21: #{conv_block.3} parent=0 // pred_fallthru
    _
  %v21 = vld [vmem:[%s0] sm:$0xff]
  %v22 = vld [vmem:[%s0 + $0x8] sm:$0xff]
  %v23 = vld [vmem:[%s0 + $0x10] sm:$0xff]
  %v24 = vld [vmem:[%s0 + $0x18] sm:$0xff]
  %v25 = vld [vmem:[%s1] sm:$0x1]
  %v27 = vlaneseq
  %v28 = vshrl.u32 %v27, 7
  %v29 = vsub.s32 0, %v28
  %v30 = vrot.slane %v25, %v29
  %v32 = vmul.f32 %v21, %v30
  %v33 = vmul.f32 %v22, %v30
  %v34 = vmul.f32 %v23, %v30
  %v35 = vmul.f32 %v24, %v30
  %v36 = vld [vmem:[%s2] sm:$0x1]
  %v38 = vlaneseq
  %v39 = vshrl.u32 %v38, 7
  %v40 = vsub.s32 0, %v39
  %v41 = vrot.slane %v36, %v40
  %v43 = vadd.f32 %v32, %v41
  %v44 = vadd.f32 %v33, %v41
  %v45 = vadd.f32 %v34, %v41
  %v46 = vadd.f32 %v35, %v41
  %v47 = vmax.f32 %v43, 0.0
  %v48 = vmax.f32 %v44, 0.0
  %v49 = vmax.f32 %v45, 0.0
  %v50 = vmax.f32 %v46, 0.0
  %v51 = vlaneseq
  %v52 = vshrl.u32 %v51, 7
  %v53 = vadd.s32 %v52, 8
  %v54 = vadd.s32 %v52, 16
  %v55 = vadd.s32 %v52, 24
  %vm56 = vcmp.lt.s32.totalorder %v52, 0
  %v57 = vsub.s32 0, %v52
  %v58 = vsel %vm56, %v57, %v52
  %v59 = vshrl.u32 %v58, 4
  %v60 = vand.u32 %v58, 15
  %v61 = vsub.s32 0, %v60
  %v62 = vsel %vm56, %v61, %v60
  %vm63 = vcmp.lt.s32.totalorder %v53, 0
  %v64 = vsub.s32 0, %v53
  %v65 = vsel %vm63, %v64, %v53
  %v66 = vshrl.u32 %v65, 4
  %v67 = vand.u32 %v65, 15
  %v68 = vsub.s32 0, %v67
  %v69 = vsel %vm63, %v68, %v67
  %vm70 = vcmp.lt.s32.totalorder %v54, 0
  %v71 = vsub.s32 0, %v54
  %v72 = vsel %vm70, %v71, %v54
  %v73 = vshrl.u32 %v72, 4
  %v74 = vand.u32 %v72, 15
  %v75 = vsub.s32 0, %v74
  %v76 = vsel %vm70, %v75, %v74
  %vm77 = vcmp.lt.s32.totalorder %v55, 0
  %v78 = vsub.s32 0, %v55
  %v79 = vsel %vm77, %v78, %v55
  %v80 = vshrl.u32 %v79, 4
  %v81 = vand.u32 %v79, 15
  %v82 = vsub.s32 0, %v81
  %v83 = vsel %vm77, %v82, %v81
  %vm84 = vcmp.ne.s32.totalorder %v62, 0
  %vm85 = vcmp.ne.s32.totalorder %v69, 0
  %vm86 = vcmp.ne.s32.totalorder %v76, 0
  %vm87 = vcmp.ne.s32.totalorder %v83, 0
  %vm88 = vcmp.lt.s32.totalorder %v62, 0
  %vm89 = vcmp.lt.s32.totalorder %v69, 0
  %vm90 = vcmp.lt.s32.totalorder %v76, 0
  %vm91 = vcmp.lt.s32.totalorder %v83, 0
  %vm92 = vmand %vm88, %vm84
  %vm93 = vmand %vm89, %vm85
  %vm94 = vmand %vm90, %vm86
  %vm95 = vmand %vm91, %vm87
  %v96 = vadd.s32 %v62, 16
  %v97 = vadd.s32 %v69, 16
  %v98 = vadd.s32 %v76, 16
  %v99 = vadd.s32 %v83, 16
  %v100 = vsel %vm92, %v96, %v62
  %v101 = vsel %vm93, %v97, %v69
  %v102 = vsel %vm94, %v98, %v76
  %v103 = vsel %vm95, %v99, %v83
  %vm104 = vcmp.eq.s32.totalorder %v100, 0
  %vm105 = vcmp.eq.s32.totalorder %v101, 0
  %vm106 = vcmp.eq.s32.totalorder %v102, 0
  %vm107 = vcmp.eq.s32.totalorder %v103, 0
  %vm112 = vcmask 1040384
  %v113 = vrot.slane %v47, 7
  %v114 = vrot.slane %v48, 7
  %v115 = vsel %vm112, %v113, %v114
  %v116 = vrot.slane %v49, 7
  %v117 = vsel %vm112, %v114, %v116
  %v118 = vrot.slane %v50, 7
  %v119 = vsel %vm112, %v116, %v118
  %v124 = vsel %vm112, 0.0, %v113
  %v125 = vsel %vm104, 0.0, %v124
  %v126 = vsel %vm105, 0.0, %v115
  %v127 = vsel %vm106, 0.0, %v117
  %v128 = vsel %vm107, 0.0, %v119
  %vm129 = vcmp.eq.s32.totalorder %v100, 15
  %vm130 = vcmp.eq.s32.totalorder %v101, 15
  %vm131 = vcmp.eq.s32.totalorder %v102, 15
  %vm132 = vcmp.eq.s32.totalorder %v103, 15
  %vm133 = vcmask 1046528
  %v134 = vrot.slane %v47, 1
  %v135 = vrot.slane %v48, 1
  %v136 = vsel %vm133, %v134, %v135
  %v137 = vrot.slane %v49, 1
  %v138 = vsel %vm133, %v135, %v137
  %v139 = vrot.slane %v50, 1
  %v140 = vsel %vm133, %v137, %v139
  %v145 = vsel %vm133, %v139, 0.0
  %v146 = vsel %vm129, 0.0, %v136
  %v147 = vsel %vm130, 0.0, %v138
  %v148 = vsel %vm131, 0.0, %v140
  %v149 = vsel %vm132, 0.0, %v145
  %150 = vrot.lane.b32.xlu0 %v47, 64
  %v151 = vpop.permute.xlu0 %150
  %152 = vrot.lane.b32.xlu0 %v48, 64
  %v153 = vpop.permute.xlu0 %152
  %154 = vrot.lane.b32.xlu0 %v49, 64
  %v155 = vpop.permute.xlu0 %154
  %156 = vrot.lane.b32.xlu0 %v50, 64
  %v157 = vpop.permute.xlu0 %156
  %vm162 = vcmask 523264
  %v163 = vsel %vm162, %v125, %v151
  %v164 = vsel %vm162, %v126, %v153
  %v165 = vsel %vm162, %v127, %v155
  %v166 = vsel %vm162, %v128, %v157
  %v167 = vpack.c.bf16 %v164, %v163
  %v168 = vpack.c.bf16 %v147, %v146
  %v169 = vpack.c.bf16 %v166, %v165
  %v170 = vpack.c.bf16 %v149, %v148
  %v171 = vld [vmem:[%s3] sm:$0xf]
  %v172 = vld [vmem:[%s3 + $0x4] sm:$0xf]
  %v173 = vld [vmem:[%s3 + $0x8] sm:$0xf]
  %v174 = vld [vmem:[%s3 + $0xc] sm:$0xf]
  %v175 = vld [vmem:[%s3 + $0x10] sm:$0xf]
  %v176 = vld [vmem:[%s3 + $0x14] sm:$0xf]
  %v177 = vld [vmem:[%s3 + $0x18] sm:$0xf]
  %v178 = vld [vmem:[%s3 + $0x1c] sm:$0xf]
  %v179 = vld [vmem:[%s3 + $0x20] sm:$0xf]
  %v180 = vld [vmem:[%s3 + $0x24] sm:$0xf]
  %v181 = vld [vmem:[%s3 + $0x28] sm:$0xf]
  %v182 = vld [vmem:[%s3 + $0x2c] sm:$0xf]
  %v183 = vld [vmem:[%s3 + $0x30] sm:$0xf]
  %v184 = vld [vmem:[%s3 + $0x34] sm:$0xf]
  %v185 = vld [vmem:[%s3 + $0x38] sm:$0xf]
  %v186 = vld [vmem:[%s3 + $0x3c] sm:$0xf]
  %v187 = vld [vmem:[%s3 + $0x40] sm:$0xf]
  %v188 = vld [vmem:[%s3 + $0x44] sm:$0xf]
  %v189 = vld [vmem:[%s3 + $0x48] sm:$0xf]
  %v190 = vld [vmem:[%s3 + $0x4c] sm:$0xf]
  %v191 = vld [vmem:[%s3 + $0x50] sm:$0xf]
  %v192 = vld [vmem:[%s3 + $0x54] sm:$0xf]
  %v193 = vld [vmem:[%s3 + $0x58] sm:$0xf]
  %v194 = vld [vmem:[%s3 + $0x5c] sm:$0xf]
  %v195 = vld [vmem:[%s4] sm:$0x1]
  %v197 = vlaneseq
  %v198 = vshrl.u32 %v197, 7
  %v199 = vsub.s32 0, %v198
  %v200 = vrot.slane %v195, %v199
  %v226 = vunpack.c.l.b16 %v171
  %v227 = vunpack.c.l.b16 %v172
  %v228 = vunpack.c.l.b16 %v173
  %v229 = vunpack.c.l.b16 %v174
  %v230 = vunpack.c.l.b16 %v175
  %v231 = vunpack.c.l.b16 %v176
  %v232 = vunpack.c.l.b16 %v177
  %v233 = vunpack.c.l.b16 %v178
  %v234 = vunpack.c.l.b16 %v179
  %v235 = vunpack.c.l.b16 %v180
  %v236 = vunpack.c.l.b16 %v181
  %v237 = vunpack.c.l.b16 %v182
  %v238 = vunpack.c.l.b16 %v183
  %v239 = vunpack.c.l.b16 %v184
  %v240 = vunpack.c.l.b16 %v185
  %v241 = vunpack.c.l.b16 %v186
  %v242 = vunpack.c.l.b16 %v187
  %v243 = vunpack.c.l.b16 %v188
  %v244 = vunpack.c.l.b16 %v189
  %v245 = vunpack.c.l.b16 %v190
  %v246 = vunpack.c.l.b16 %v191
  %v247 = vunpack.c.l.b16 %v192
  %v248 = vunpack.c.l.b16 %v193
  %v249 = vunpack.c.l.b16 %v194
  %v250 = vpack.c.b16 %v227, %v226
  %v251 = vpack.c.b16 %v229, %v228
  %v252 = vpack.c.b16 %v231, %v230
  %v253 = vpack.c.b16 %v233, %v232
  %v254 = vpack.c.b16 %v235, %v234
  %v255 = vpack.c.b16 %v237, %v236
  %v256 = vpack.c.b16 %v239, %v238
  %v257 = vpack.c.b16 %v241, %v240
  %v258 = vpack.c.b16 %v243, %v242
  %v259 = vpack.c.b16 %v245, %v244
  %v260 = vpack.c.b16 %v247, %v246
  %v261 = vpack.c.b16 %v249, %v248
  %v275 = vsel %vm162, %v168, 0
  %v278 = vsel %vm162, %v170, 0
  %280 = vmatprep.subr.bf16.mxu0 0
  %281 = vmatpush1.bf16.msra.mxu0 %v257
  %282 = vmatprep.subr.bf16.mxu0 0
  %283 = vmatpush1.bf16.msra.mxu0 %v256
  %284 = vmatprep.subr.bf16.mxu0 0
  %285 = vmatpush1.bf16.msra.mxu0 %v255
  %286 = vmatprep.subr.bf16.mxu0 0
  %287 = vmatpush1.bf16.msra.mxu0 %v254
  %288 = vmatprep.subr.bf16.mxu0 0
  %289 = vmatpush1.bf16.msra.mxu0 %v253
  %290 = vmatprep.subr.bf16.mxu0 0
  %291 = vmatpush1.bf16.msra.mxu0 %v252
  %292 = vmatprep.subr.bf16.mxu0 0
  %293 = vmatpush1.bf16.msra.mxu0 %v251
  %294 = vmatprep.subr.bf16.mxu0 0
  %295 = vmatpush1.bf16.msra.mxu0 %v250
  %296 = vmatprep.subr.bf16.mxu0 0
  %297 = vmatpush2.bf16.msra.mxu0 0
  %298 = vmatprep.subr.bf16.mxu0 0
  %299 = vmatpush2.bf16.msra.mxu0 0
  %300 = vmatprep.subr.bf16.mxu0 0
  %301 = vmatpush2.bf16.msra.mxu0 0
  %302 = vmatprep.subr.bf16.mxu0 0
  %303 = vmatpush2.bf16.msra.mxu0 0
  %304 = vmatprep.subr.bf16.mxu0 0
  %305 = vmatpush2.bf16.msra.mxu0 %v261
  %306 = vmatprep.subr.bf16.mxu0 0
  %307 = vmatpush2.bf16.msra.mxu0 %v260
  %308 = vmatprep.subr.bf16.mxu0 0
  %309 = vmatpush2.bf16.msra.mxu0 %v259
  %310 = vmatprep.subr.bf16.mxu0 0
  %311 = vmatpush2.bf16.msra.mxu0 %v258
  %312 = vmatprep.mubr.bf16.mxu0 %v275
  %313 = vmatmul.mubr.bf16.gmra.mxu0 %v167
  %v314 = vpop.f32.mrf.mxu0
  %v315 = vadd.f32 %v200, %v314
  %v316 = vpop.f32.mrf.mxu0
  %v317 = vpop.f32.mrf.mxu0
  %v318 = vadd.f32 %v200, %v317
  %v319 = vpop.f32.mrf.mxu0
  %320 = vmatprep.mubr.bf16.mxu0 %v278
  %321 = vmatmul.mubr.bf16.gmra.mxu0 %v169
  %v322 = vpop.f32.mrf.mxu0
  %v323 = vadd.f32 %v200, %v322
  %v324 = vpop.f32.mrf.mxu0
  %v325 = vpop.f32.mrf.mxu0
  %v326 = vadd.f32 %v200, %v325
  %v327 = vpop.f32.mrf.mxu0
  %328 = vdwg.mxu0
  %329 = vst [vmem:[%s5] sm:$0xff] %v315
  %330 = vst [vmem:[%s5 + $0x8] sm:$0xff] %v318
  %331 = vst [vmem:[%s5 + $0x10] sm:$0xff] %v323
  %332 = vst [vmem:[%s5 + $0x18] sm:$0xff] %v326
  // Predicated region
  $region22: #{conv_block.3} parent=0 // pred_check
    _
  $region23: #{conv_block.3} parent=0 // pred_check_branch
    %334 = sbr.rel (0) target = $region25
  $region24: #{conv_block.3} parent=0 // pred_region
    _
  $region25: #{conv_block.3} parent=0 // pred_fallthru
    _
  // Predicated region
  $region26: #{conv_block.3} parent=0 // pred_check
    _
  $region27: #{conv_block.3} parent=0 // pred_check_branch
    %336 = sbr.rel (0) target = $region29
  $region28: #{conv_block.3} parent=0 // pred_region
    _
  $region29: #{conv_block.3} parent=0 // pred_fallthru
    _

</llo_original>
